<compile_context>
chip_gen: v7x
topology: tpu7x:2x2x1
jax: 0.10.0
libtpu: 0.0.40
codegen_flags: <defaults>
</compile_context>

<pallas_src>
import jax
import jax.numpy as jnp
from jax.experimental import pallas as pl
from jax.experimental.pallas import tpu as pltpu


def _round_up(n, m):
    return ((n + m - 1) // m) * m


def _dist_value_head_kernel(x_ref, w_ref, b_ref, v_ref, logp_ref, mean_ref):
    # x_ref:    (TB, D)      input features (cast to bf16 here for the MXU)
    # w_ref:    (D,  A_pad)  linear weight, transposed, bf16, zero-padded cols
    # b_ref:    (1,  A_pad)  bias, f32, padded lanes = -1e30
    # v_ref:    (1,  A_pad)  support values, f32, padded lanes = 0
    # logp_ref: (TB, A_pad)  f32 log-probs (softmax-equivalent logits)
    # mean_ref: (TB, 1)      f32 support-weighted mean
    x = x_ref[...].astype(jnp.bfloat16)

    # Linear layer: bf16 MXU matmul with f32 accumulation (matches nn.Linear).
    logits = jnp.dot(x, w_ref[...], preferred_element_type=jnp.float32) + b_ref[...]

    # Softmax over the lane-dense 128-wide atom axis, all in f32 (required on
    # v5e, and required for the -1e30 padding sentinel to stay finite).
    m = jnp.max(logits, axis=-1, keepdims=True)
    e = jnp.exp(logits - m)                       # padded lanes: exp(-1e30) == 0
    denom = jnp.sum(e, axis=-1, keepdims=True)

    # Single full-width store: log-probs (padded lanes stay at ~ -1e30).
    logp_ref[...] = logits - m - jnp.log(denom)

    # Fused support-weighted mean; padded support values are 0 so padded lanes
    # contribute exactly nothing. approx reciprocal runs on the EUP slot.
    wsum = jnp.sum(e * v_ref[...], axis=-1, keepdims=True)
    mean_ref[...] = wsum * pl.reciprocal(denom, approx=True)


class CategoricalWithSupport:
    """Mirrors the torch distribution: exposes logits / probs / mean()."""

    def __init__(self, values, padded_log_probs, mean, num_atoms):
        self.values = values                         # (A,) unpadded support
        self._padded_log_probs = padded_log_probs    # (B, A_pad)
        self._mean = mean                            # (B,)
        self._num_atoms = num_atoms

    @property
    def logits(self):
        # Log-probs: a valid, softmax-equivalent logits parameterization
        # (identical probs / cross-entropy / mean as the raw linear output).
        return self._padded_log_probs[:, : self._num_atoms]

    @property
    def log_probs(self):
        return self._padded_log_probs[:, : self._num_atoms]

    @property
    def probs(self):
        return jnp.exp(self._padded_log_probs[:, : self._num_atoms])

    def mean(self):
        return self._mean


class DistributionalValueHead:
    def __init__(self, vmin, vmax, num_atoms, input_size, key):
        self.num_atoms = num_atoms
        self.input_size = input_size
        # Pad the atom axis to the next lane multiple (128).
        A_pad = _round_up(num_atoms, 128)
        self.padded_atoms = A_pad

        self.values = jnp.linspace(vmin, vmax, num_atoms, dtype=jnp.float32)
        # Pre-padded support row (1, A_pad); padded lanes = 0.
        self.values_padded = (
            jnp.zeros((1, A_pad), jnp.float32).at[0, :num_atoms].set(self.values))

        # Deterministic init matching nn.Linear's default
        # U(-1/sqrt(fan_in), +1/sqrt(fan_in)).
        k_w, k_b = jax.random.split(key)
        bound = 1.0 / (input_size ** 0.5)
        w = jax.random.uniform(
            k_w, (input_size, num_atoms), jnp.float32, -bound, bound)
        self.bias = jax.random.uniform(
            k_b, (num_atoms,), jnp.float32, -bound, bound)

        # Pre-transposed, pre-padded bf16 weight (D, A_pad); unused cols = 0.
        self.weight_t = (
            jnp.zeros((input_size, A_pad), jnp.float32)
            .at[:, :num_atoms].set(w)
        ).astype(jnp.bfloat16)
        # Pre-padded bias row (1, A_pad); padded lanes = -1e30 so softmax -> 0.
        # (Safe only while post-matmul math stays f32 — see kernel comment.)
        self.bias_padded = (
            jnp.full((1, A_pad), -1e30, jnp.float32)
            .at[0, :num_atoms].set(self.bias))

    def _tile_rows(self, B):
        # Tiny batches: one tile — pallas_call overhead dominates regardless.
        if B <= 16:
            return B
        # Otherwise: at least 2 tiles so the "parallel" grid axis can shard
        # across both v7x TensorCores; cap at 2048 rows (~2.6 MiB of
        # double-buffered VMEM — comfortably under v5e's 16 MiB scoped default)
        # while still amortizing the ~0.35 us per-step pipeline overhead.
        return min(2048, _round_up(pl.cdiv(B, 2), 8))

    def __call__(self, inputs):
        B, D = inputs.shape
        assert D == self.input_size
        A_pad = self.padded_atoms

        TB = self._tile_rows(B)
        grid = (pl.cdiv(B, TB),)

        padded_log_probs, mean = pl.pallas_call(
            _dist_value_head_kernel,
            out_shape=(
                jax.ShapeDtypeStruct((B, A_pad), jnp.float32),
                jax.ShapeDtypeStruct((B, 1), jnp.float32),
            ),
            grid_spec=pltpu.PrefetchScalarGridSpec(
                num_scalar_prefetch=0,
                grid=grid,
                in_specs=[
                    pl.BlockSpec((TB, D), lambda i: (i, 0)),
                    pl.BlockSpec((D, A_pad), lambda i: (0, 0)),
                    pl.BlockSpec((1, A_pad), lambda i: (0, 0)),
                    pl.BlockSpec((1, A_pad), lambda i: (0, 0)),
                ],
                out_specs=[
                    pl.BlockSpec((TB, A_pad), lambda i: (i, 0)),
                    pl.BlockSpec((TB, 1), lambda i: (i, 0)),
                ],
            ),
            compiler_params=pltpu.CompilerParams(
                dimension_semantics=("parallel",),
                vmem_limit_bytes=32 * 1024 * 1024,
            ),
        )(inputs, self.weight_t, self.bias_padded, self.values_padded)

        return CategoricalWithSupport(
            self.values, padded_log_probs, mean[:, 0], self.num_atoms)


def _reference(head, x):
    """Plain-JAX reference matching the kernel's bf16-input / f32-accumulate dot."""
    x_bf = x.astype(jnp.bfloat16).astype(jnp.float32)
    w_f32 = head.weight_t[:, : head.num_atoms].astype(jnp.float32)
    logits = jnp.dot(x_bf, w_f32, precision=jax.lax.Precision.HIGHEST) + head.bias
    log_probs = jax.nn.log_softmax(logits, axis=-1)
    probs = jax.nn.softmax(logits, axis=-1)
    mean = jnp.sum(probs * head.values, axis=-1)
    return log_probs, probs, mean


if __name__ == "__main__":
    key = jax.random.PRNGKey(0)
    k_param, k_x1, k_x2 = jax.random.split(key, 3)

    input_size = 32
    num_atoms = 51
    vmin, vmax = -10.0, 10.0

    head = DistributionalValueHead(vmin, vmax, num_atoms, input_size, k_param)

    # --- small batch: single-tile path ---------------------------------------
    batch = 8
    x = jax.random.normal(k_x1, (batch, input_size), dtype=jnp.float32)
    dist = head(x)
    log_probs, probs, mean = dist.log_probs, dist.probs, dist.mean()
    jax.block_until_ready((log_probs, probs, mean))

    ref_lp, ref_p, ref_m = _reference(head, x)
    assert jnp.allclose(log_probs, ref_lp, atol=1e-3, rtol=1e-3)
    assert jnp.allclose(probs, ref_p, atol=1e-4, rtol=1e-4)
    assert jnp.allclose(mean, ref_m, atol=5e-3, rtol=5e-3)
    # Padded lanes must carry exactly zero probability mass.
    pad_probs = jnp.exp(dist._padded_log_probs[:, num_atoms:])
    assert float(jnp.max(pad_probs)) == 0.0

    # --- larger, non-divisible batch: multi-tile path with a partial tile ----
    batch2 = 300
    x2 = jax.random.normal(k_x2, (batch2, input_size), dtype=jnp.float32)
    dist2 = head(x2)
    lp2, p2, m2 = dist2.log_probs, dist2.probs, dist2.mean()
    jax.block_until_ready((lp2, p2, m2))

    ref_lp2, ref_p2, ref_m2 = _reference(head, x2)
    assert lp2.shape == (batch2, num_atoms) and m2.shape == (batch2,)
    assert jnp.allclose(lp2, ref_lp2, atol=1e-3, rtol=1e-3)
    assert jnp.allclose(p2, ref_p2, atol=1e-4, rtol=1e-4)
    assert jnp.allclose(m2, ref_m2, atol=5e-3, rtol=5e-3)
    assert bool(jnp.all(jnp.isfinite(lp2))) and bool(jnp.all(jnp.isfinite(m2)))

    print("KERNEL_OK")
</pallas_src>

<mosaic_0001>
module attributes {stable_mosaic.version = 11 : i64} {
  func.func @_dist_value_head_kernel(%arg0: i32, %arg1: memref<8x32xf32, #tpu.memory_space<vmem>>, %arg2: memref<32x128xbf16, #tpu.memory_space<vmem>>, %arg3: memref<1x128xf32, #tpu.memory_space<vmem>>, %arg4: memref<1x128xf32, #tpu.memory_space<vmem>>, %arg5: memref<8x128xf32, #tpu.memory_space<vmem>>, %arg6: memref<8x1xf32, #tpu.memory_space<vmem>>) attributes {dimension_semantics = [#tpu.dimension_semantics<parallel>], iteration_bounds = array<i64: 1>, scalar_prefetch = 0 : i64, scratch_operands = 0 : i64, tpu.core_type = #tpu.core_type<tc>, window_params = [{transform_indices = @transform_0, window_bounds = array<i64: 8, 32>}, {pipeline_mode = #tpu.pipeline_mode<synchronous>, transform_indices = @transform_1, window_bounds = array<i64: 32, 128>}, {pipeline_mode = #tpu.pipeline_mode<synchronous>, transform_indices = @transform_2, window_bounds = array<i64: 1, 128>}, {pipeline_mode = #tpu.pipeline_mode<synchronous>, transform_indices = @transform_3, window_bounds = array<i64: 1, 128>}, {transform_indices = @transform_4, window_bounds = array<i64: 8, 128>}, {transform_indices = @transform_5, window_bounds = array<i64: 8, 1>}]} {
    %c0 = arith.constant 0 : index
    %c0_0 = arith.constant 0 : index
    %0 = vector.load %arg1[%c0, %c0_0] : memref<8x32xf32, #tpu.memory_space<vmem>>, vector<8x32xf32>
    %1 = arith.truncf %0 : vector<8x32xf32> to vector<8x32xbf16>
    %c0_1 = arith.constant 0 : index
    %c0_2 = arith.constant 0 : index
    %2 = vector.load %arg2[%c0_1, %c0_2] : memref<32x128xbf16, #tpu.memory_space<vmem>>, vector<32x128xbf16>
    %cst = arith.constant dense<0.000000e+00> : vector<8x128xf32>
    %3 = tpu.matmul %1, %2, %cst {dimension_numbers = #tpu.dot_dimension_numbers<[1], [0], [0], [1], [0, 0, 1, 1], [], []>} : vector<8x32xbf16>, vector<32x128xbf16>, vector<8x128xf32> -> vector<8x128xf32>
    %c0_3 = arith.constant 0 : index
    %c0_4 = arith.constant 0 : index
    %4 = vector.load %arg3[%c0_3, %c0_4] : memref<1x128xf32, #tpu.memory_space<vmem>>, vector<1x128xf32>
    %5 = vector.broadcast %4 : vector<1x128xf32> to vector<8x128xf32>
    %6 = arith.addf %3, %5 : vector<8x128xf32>
    %cst_5 = arith.constant dense<0xFF800000> : vector<8xf32>
    %7 = vector.multi_reduction <maximumf>, %6, %cst_5 [1] : vector<8x128xf32> to vector<8xf32>
    %8 = vector.shape_cast %7 : vector<8xf32> to vector<8x1xf32>
    %9 = vector.broadcast %8 : vector<8x1xf32> to vector<8x128xf32>
    %10 = arith.subf %6, %9 : vector<8x128xf32>
    %11 = math.exp %10 : vector<8x128xf32>
    %cst_6 = arith.constant dense<0.000000e+00> : vector<8xf32>
    %12 = vector.multi_reduction <add>, %11, %cst_6 [1] : vector<8x128xf32> to vector<8xf32>
    %13 = vector.shape_cast %12 : vector<8xf32> to vector<8x1xf32>
    %14 = vector.broadcast %8 : vector<8x1xf32> to vector<8x128xf32>
    %15 = arith.subf %6, %14 : vector<8x128xf32>
    %16 = math.log %13 : vector<8x1xf32>
    %17 = vector.broadcast %16 : vector<8x1xf32> to vector<8x128xf32>
    %18 = arith.subf %15, %17 : vector<8x128xf32>
    %c0_7 = arith.constant 0 : index
    %c0_8 = arith.constant 0 : index
    %19 = vector.load %arg5[%c0_7, %c0_8] : memref<8x128xf32, #tpu.memory_space<vmem>>, vector<8x128xf32>
    tpu.vector_store %arg5[%c0_7, %c0_8], %18 {strides = array<i32>} : memref<8x128xf32, #tpu.memory_space<vmem>>, vector<8x128xf32>,
    %c0_9 = arith.constant 0 : index
    %c0_10 = arith.constant 0 : index
    %20 = vector.load %arg4[%c0_9, %c0_10] : memref<1x128xf32, #tpu.memory_space<vmem>>, vector<1x128xf32>
    %21 = vector.broadcast %20 : vector<1x128xf32> to vector<8x128xf32>
    %22 = arith.mulf %11, %21 : vector<8x128xf32>
    %cst_11 = arith.constant dense<0.000000e+00> : vector<8xf32>
    %23 = vector.multi_reduction <add>, %22, %cst_11 [1] : vector<8x128xf32> to vector<8xf32>
    %24 = vector.shape_cast %23 : vector<8xf32> to vector<8x1xf32>
    %25 = tpu.reciprocal %13 {approx = true} : vector<8x1xf32> -> vector<8x1xf32>
    %26 = arith.mulf %24, %25 : vector<8x1xf32>
    %c0_12 = arith.constant 0 : index
    %c0_13 = arith.constant 0 : index
    %27 = vector.load %arg6[%c0_12, %c0_13] : memref<8x1xf32, #tpu.memory_space<vmem>>, vector<8x1xf32>
    tpu.vector_store %arg6[%c0_12, %c0_13], %26 {strides = array<i32>} : memref<8x1xf32, #tpu.memory_space<vmem>>, vector<8x1xf32>,
    return
  }
  func.func @transform_0(%arg0: i32) -> (i32, i32) {
    %c0_i32 = arith.constant 0 : i32
    %c0_i32_0 = arith.constant 0 : i32
    return %arg0, %c0_i32 : i32, i32
  }
  func.func @transform_1(%arg0: i32) -> (i32, i32) {
    %c0_i32 = arith.constant 0 : i32
    %c0_i32_0 = arith.constant 0 : i32
    %c0_i32_1 = arith.constant 0 : i32
    return %c0_i32, %c0_i32_0 : i32, i32
  }
  func.func @transform_2(%arg0: i32) -> (i32, i32) {
    %c0_i32 = arith.constant 0 : i32
    %c0_i32_0 = arith.constant 0 : i32
    %c0_i32_1 = arith.constant 0 : i32
    return %c0_i32, %c0_i32_0 : i32, i32
  }
  func.func @transform_3(%arg0: i32) -> (i32, i32) {
    %c0_i32 = arith.constant 0 : i32
    %c0_i32_0 = arith.constant 0 : i32
    %c0_i32_1 = arith.constant 0 : i32
    return %c0_i32, %c0_i32_0 : i32, i32
  }
  func.func @transform_4(%arg0: i32) -> (i32, i32) {
    %c0_i32 = arith.constant 0 : i32
    %c0_i32_0 = arith.constant 0 : i32
    return %arg0, %c0_i32 : i32, i32
  }
  func.func @transform_5(%arg0: i32) -> (i32, i32) {
    %c0_i32 = arith.constant 0 : i32
    %c0_i32_0 = arith.constant 0 : i32
    return %arg0, %c0_i32 : i32, i32
  }
}

</mosaic_0001>

<llo_original>
// kernel: tpu_custom_call.1
$region0: #{tpu_custom_call.1}
  #allocation0 [shape = 'u32[]', space=smem, size = 0x4, offset = 0x4, fixed_abs, tag = 'smem constant byte address 0x4 - core index']
  #allocation1 [shape = 'u32[144,128]{1,0:T(1,128)}', space=vmem, size = 0x12000, scoped, tag = 'internal scratch']
  %s0 = inlined_call_operand.hbm [shape: f32[8,32], index: 0, kind: input, shape index: {}]
  %s1 = inlined_call_operand.hbm [shape: bf16[32,128], index: 1, kind: input, shape index: {}]
  %s2 = inlined_call_operand.vmem [shape: f32[1,128], index: 2, kind: input, shape index: {}]
  %s3 = inlined_call_operand.vmem [shape: f32[1,128], index: 3, kind: input, shape index: {}]
  %s4 = inlined_call_operand.hbm [shape: f32[8,128], index: 4, kind: output, shape index: {0}]
  %s5 = inlined_call_operand.vmem [shape: f32[8,1], index: 5, kind: output, shape index: {1}]
  %6 = xla_tuple %s4, %s5
  %s7 = sld [smem:[#allocation0]]
  $region42: #{tpu_custom_call.1} parent=0
    _
  %s9 = ssub.s32 1, %s7
  %s10 = scalar_select 0, %s9, %s7
  $region1: #{tpu_custom_call.1} parent=0
    #allocation2 [shape = 'u8[4096]{0}', space=vmem, size = 0x1000, scoped, tag = 'input window, operand 0, single buffered']
    #allocation3 [shape = 's32[1]{0}', space=sflag, size = 0x4, scoped, tag = 'scoped memory for tpu_custom_call.1']
    #allocation4 [shape = 's32[1]{0}', space=sflag, size = 0x4, scoped, tag = 'scoped memory for tpu_custom_call.1']
    #allocation5 [shape = 'u8[8192]{0}', space=vmem, size = 0x2000, scoped, tag = 'input window, operand 1, single buffered']
    #allocation6 [shape = 's32[1]{0}', space=sflag, size = 0x4, scoped, tag = 'scoped memory for tpu_custom_call.1']
    #allocation7 [shape = 'u8[4096]{0}', space=vmem, size = 0x1000, scoped, tag = 'output window, operand 0, single buffered']
    %11 = vsyncpa [#allocation3], 0
    %12 = vsyncpa [#allocation6], 0
    %13 = vsyncpa [#allocation4], 0
    // Predicated region
    $region2: #{tpu_custom_call.1} parent=1 // pred_check
      _
    $region3: #{tpu_custom_call.1} parent=1 // pred_check_branch
      %15 = sbr.rel (0) target = $region5
    $region4: #{tpu_custom_call.1} parent=1 // pred_region
      %s17 = ssub.s32 128, 128
      %18 = vsyncadd [#allocation3], %s17
      %s20 = sshll.u32 [#allocation2], 4
      %s21 = int_to_ptr.vmem [resolvable:$true] %s20
      %23 = dma.hbm_to_vmem [thread:$0]  %s0, 128, %s21, [#allocation3]
    $region5: #{tpu_custom_call.1} parent=1 // pred_fallthru
      _
    // Predicated region
    $region6: #{tpu_custom_call.1} parent=1 // pred_check
      _
    $region7: #{tpu_custom_call.1} parent=1 // pred_check_branch
      %25 = sbr.rel (0) target = $region9
    $region8: #{tpu_custom_call.1} parent=1 // pred_region
      %s27 = ssub.s32 256, 256
      %28 = vsyncadd [#allocation6], %s27
      %s29 = sshll.u32 [#allocation5], 4
      %s30 = int_to_ptr.vmem [resolvable:$true] %s29
      %35 = dma.hbm_to_vmem [thread:$0]  %s1, 256, %s30, [#allocation6], 64, 64, 4
    $region9: #{tpu_custom_call.1} parent=1 // pred_fallthru
      _
    // Predicated region
    $region10: #{tpu_custom_call.1} parent=1 // pred_check
      _
    $region11: #{tpu_custom_call.1} parent=1 // pred_check_branch
      %37 = sbr.rel (0) target = $region13
    $region12: #{tpu_custom_call.1} parent=1 // pred_region
      _
    $region13: #{tpu_custom_call.1} parent=1 // pred_fallthru
      _
    // Predicated region
    $region14: #{tpu_custom_call.1} parent=1 // pred_check
      _
    $region15: #{tpu_custom_call.1} parent=1 // pred_check_branch
      %39 = sbr.rel (0) target = $region17
    $region16: #{tpu_custom_call.1} parent=1 // pred_region
      _
    $region17: #{tpu_custom_call.1} parent=1 // pred_fallthru
      _
    // Predicated region
    $region18: #{tpu_custom_call.1} parent=1 // pred_check
      _
    $region19: #{tpu_custom_call.1} parent=1 // pred_check_branch
      %41 = sbr.rel (0) target = $region21
    $region20: #{tpu_custom_call.1} parent=1 // pred_region
      %42 = dma.done [#allocation3], 128
    $region21: #{tpu_custom_call.1} parent=1 // pred_fallthru
      _
    // Predicated region
    $region22: #{tpu_custom_call.1} parent=1 // pred_check
      _
    $region23: #{tpu_custom_call.1} parent=1 // pred_check_branch
      %44 = sbr.rel (0) target = $region25
    $region24: #{tpu_custom_call.1} parent=1 // pred_region
      %45 = dma.done [#allocation6], 256
    $region25: #{tpu_custom_call.1} parent=1 // pred_fallthru
      _
    %v47 = vld [vmem:[#allocation2] sm:$0xff]
    %v48 = vpack.c.bf16 %v47, %v47
    %v49 = vld [vmem:[#allocation5] sm:$0xf]
    %v50 = vld [vmem:[#allocation5 + $0x4] sm:$0xf]
    %v51 = vld [vmem:[#allocation5 + $0x8] sm:$0xf]
    %v52 = vld [vmem:[#allocation5 + $0xc] sm:$0xf]
    %v53 = vld [vmem:[%s2] sm:$0x1]
    %v55 = vlaneseq
    %v56 = vshrl.u32 %v55, 7
    %v57 = vsub.s32 0, %v56
    %v58 = vrot.slane %v53, %v57
    %v64 = vunpack.c.l.b16 %v49
    %v65 = vunpack.c.l.b16 %v50
    %v66 = vunpack.c.l.b16 %v51
    %v67 = vunpack.c.l.b16 %v52
    %v68 = vpack.c.b16 %v65, %v64
    %v69 = vpack.c.b16 %v67, %v66
    %vm72 = vcmask 261120
    %v74 = vsel %vm72, %v48, 0
    %76 = vmatprep.subr.bf16.mxu0 0
    %77 = vmatpush1.bf16.msra.mxu0 %v68
    %78 = vmatprep.subr.bf16.mxu0 0
    %79 = vmatpush1.bf16.msra.mxu0 %v69
    %80 = vmatprep.subr.bf16.mxu0 0
    %81 = vmatpush1.bf16.msra.mxu0 0
    %82 = vmatprep.subr.bf16.mxu0 0
    %83 = vmatpush1.bf16.msra.mxu0 0
    %84 = vmatprep.subr.bf16.mxu0 0
    %85 = vmatpush1.bf16.msra.mxu0 0
    %86 = vmatprep.subr.bf16.mxu0 0
    %87 = vmatpush1.bf16.msra.mxu0 0
    %88 = vmatprep.subr.bf16.mxu0 0
    %89 = vmatpush1.bf16.msra.mxu0 0
    %90 = vmatprep.subr.bf16.mxu0 0
    %91 = vmatpush1.bf16.msra.mxu0 0
    %92 = vmatprep.subr.bf16.mxu0 0
    %93 = vmatpush1.bf16.msra.mxu0 0
    %94 = vmatprep.subr.bf16.mxu0 0
    %95 = vmatpush1.bf16.msra.mxu0 0
    %96 = vmatprep.subr.bf16.mxu0 0
    %97 = vmatpush1.bf16.msra.mxu0 0
    %98 = vmatprep.subr.bf16.mxu0 0
    %99 = vmatpush1.bf16.msra.mxu0 0
    %100 = vmatprep.subr.bf16.mxu0 0
    %101 = vmatpush1.bf16.msra.mxu0 0
    %102 = vmatprep.subr.bf16.mxu0 0
    %103 = vmatpush1.bf16.msra.mxu0 0
    %104 = vmatprep.subr.bf16.mxu0 0
    %105 = vmatpush1.bf16.msra.mxu0 0
    %106 = vmatprep.subr.bf16.mxu0 0
    %107 = vmatpush1.bf16.msra.mxu0 0
    %108 = vmatprep.mubr.bf16.mxu0 0
    %109 = vmatmul.mubr.bf16.gmra.mrb[0].mxu0 %v74
    %v110 = vpop.f32.mrb[0].mxu0
    %v111 = vadd.f32 %v58, %v110
    %v112 = vpop.f32.mrb[0].mxu0
    %v113 = vpop.f32.mrb[0].mxu0
    %v114 = vpop.f32.mrb[0].mxu0
    %115 = vdwg.mxu0
    %116 = vmax.xlane.f32.xlu0 %v111
    %v117 = vpop.xlane.xlu0 %116
    %v118 = vsub.f32 %v111, %v117
    %v119 = vmul.f32 %v118, 1.442695
    %v120 = vpow.pop %v119
    %121 = vadd.xlane.f32.xlu0 %v120
    %v122 = vpop.xlane.xlu0 %121
    %v123 = vlog2.pop %v122
    %v124 = vmul.f32 %v123, 0.6931472
    %v125 = vsub.f32 %v118, %v124
    %126 = vst [vmem:[#allocation7] sm:$0xff] %v125
    %v127 = vld [vmem:[%s3] sm:$0x1]
    %v129 = vlaneseq
    %v130 = vshrl.u32 %v129, 7
    %v131 = vsub.s32 0, %v130
    %v132 = vrot.slane %v127, %v131
    %v134 = vmul.f32 %v120, %v132
    %135 = vadd.xlane.f32.xlu0 %v134
    %v136 = vpop.xlane.xlu0 %135
    %v137 = vrcp.pop %v122
    %v138 = vmul.f32 %v136, %v137
    %vm139 = vcmask 7168
    %140 = vst.msk [vmem:[%s5] sm:$0xff] %vm139, %v138
    // Predicated region
    $region26: #{tpu_custom_call.1} parent=1 // pred_check
      _
    $region27: #{tpu_custom_call.1} parent=1 // pred_check_branch
      %142 = sbr.rel (0) target = $region29
    $region28: #{tpu_custom_call.1} parent=1 // pred_region
      %s144 = ssub.s32 128, 128
      %145 = vsyncadd [#allocation4], %s144
      %s147 = sshll.u32 [#allocation7], 4
      %s148 = int_to_ptr.vmem [resolvable:$true] %s147
      %150 = dma.vmem_to_hbm [thread:$0]  %s148, 128, %s4, [#allocation4]
    $region29: #{tpu_custom_call.1} parent=1 // pred_fallthru
      _
    // Predicated region
    $region30: #{tpu_custom_call.1} parent=1 // pred_check
      _
    $region31: #{tpu_custom_call.1} parent=1 // pred_check_branch
      %152 = sbr.rel (0) target = $region33
    $region32: #{tpu_custom_call.1} parent=1 // pred_region
      _
    $region33: #{tpu_custom_call.1} parent=1 // pred_fallthru
      _
    // Predicated region
    $region34: #{tpu_custom_call.1} parent=1 // pred_check
      _
    $region35: #{tpu_custom_call.1} parent=1 // pred_check_branch
      %154 = sbr.rel (0) target = $region37
    $region36: #{tpu_custom_call.1} parent=1 // pred_region
      %155 = dma.done [#allocation4], 128
    $region37: #{tpu_custom_call.1} parent=1 // pred_fallthru
      _
    // Predicated region
    $region38: #{tpu_custom_call.1} parent=1 // pred_check
      _
    $region39: #{tpu_custom_call.1} parent=1 // pred_check_branch
      %157 = sbr.rel (0) target = $region41
    $region40: #{tpu_custom_call.1} parent=1 // pred_region
      _
    $region41: #{tpu_custom_call.1} parent=1 // pred_fallthru
      _
    %158 = vsyncpa [#allocation3], 1
    %159 = vsyncpa [#allocation6], 1
    %160 = vsyncpa [#allocation4], 1

</llo_original>
